<compile_context>
chip_gen: v7x
topology: tpu7x:2x2x1
jax: 0.10.0
libtpu: 0.0.40
codegen_flags: <defaults>
</compile_context>

<pallas_src>
import jax
import jax.numpy as jnp
from jax.experimental import pallas as pl
from jax.experimental.pallas import tpu as pltpu

EMBEDDING_SIZE = 200            # size of concatenated encoder output
HIDDEN_SIZE = 100
STATE_NUMBER = 5
ENC_OUT = EMBEDDING_SIZE // 2   # each encoder contributes 100 features

LANE = 128
ENC_P = 128                     # lane-padded encoder output width
HID_P = 128                     # lane-padded hidden width
OUT_COLS = 8                    # output columns written back (5 real + 3 pad)
NEG_INF = -1e30                 # bias for padded logit lanes (f32 only!)


def _round_up(x, m):
    return (x + m - 1) // m * m


def _pad2(a, rows, cols):
    return jnp.pad(a, ((0, rows - a.shape[0]), (0, cols - a.shape[1])))


def mainnn_kernel(x0_ref, x1_ref, we0_ref, we1_ref, w1m_ref, w2_ref, bias_ref,
                  o_ref):
    """Fused: enc0/enc1 (Linear+ReLU) -> merged linear1+ReLU -> linear2
    -> log_softmax. Activations are 128-lane dense; output is 8 lanes wide."""
    bias = bias_ref[...]                 # (8, 128) packed biases, VMEM-resident
    be0 = bias[0:1, :]
    be1 = bias[1:2, :]
    b1 = bias[2:3, :]
    b2 = bias[3:4, :OUT_COLS]            # real b2 + NEG_INF in cols 5..7

    # Encoders (Linear + ReLU) at native K = in_dim; padded out-lanes are zero.
    e0 = jnp.maximum(
        jnp.dot(x0_ref[...], we0_ref[...], preferred_element_type=jnp.float32)
        + be0, 0.0)
    e1 = jnp.maximum(
        jnp.dot(x1_ref[...], we1_ref[...], preferred_element_type=jnp.float32)
        + be1, 0.0)

    # Layer 1: lane-concat e0|e1 once, single K=256 MXU contraction with the
    # merged W1 (rows 0..99 act on e0, rows 128..227 on e1; rest are zero).
    e = jnp.concatenate([e0, e1], axis=-1)                     # (TB, 256)
    h = jnp.maximum(
        jnp.dot(e, w1m_ref[...], preferred_element_type=jnp.float32) + b1, 0.0)

    # Layer 2 into 8 lanes; padded lanes carry a -1e30 bias so they never
    # affect max / logsumexp. Numerically-stable log_softmax over 8 lanes.
    logits = jnp.dot(h, w2_ref[...], preferred_element_type=jnp.float32) + b2
    m = jnp.max(logits, axis=-1, keepdims=True)
    shifted = logits - m
    lse = jnp.log(jnp.sum(jnp.exp(shifted), axis=-1, keepdims=True))
    o_ref[...] = shifted - lse


def mainnn_forward(x0, x1, we0, be0, we1, be1, w1, b1, w2, b2):
    """Full fused forward. x0/x1: [B, in_dim] raw encoder inputs.
    Weights are [in, out]; biases 1-D. Returns [B, 5] log-probs (float32)."""
    B, in_dim = x0.shape
    x0 = x0.astype(jnp.float32)
    x1 = x1.astype(jnp.float32)

    # ---- one-time parameter prep (off hot path) ----
    # Encoder weights: pad only the output dim (100 -> 128); K stays native.
    we0_p = _pad2(we0.astype(jnp.float32), in_dim, ENC_P)
    we1_p = _pad2(we1.astype(jnp.float32), in_dim, ENC_P)

    # Merged layer-1 weight (256, 128): rows 0..99 for e0, rows 128..227 for e1.
    w1m = jnp.zeros((2 * ENC_P, HID_P), jnp.float32)
    w1m = w1m.at[:ENC_OUT, :HIDDEN_SIZE].set(w1[:ENC_OUT].astype(jnp.float32))
    w1m = w1m.at[ENC_P:ENC_P + ENC_OUT, :HIDDEN_SIZE].set(
        w1[ENC_OUT:].astype(jnp.float32))

    # Layer-2 weight padded to (128, 8): only 5 real columns.
    w2_p = _pad2(w2.astype(jnp.float32), HID_P, OUT_COLS)

    # Packed biases: one (8, 128) VMEM tile instead of four 1-row input streams.
    bias = jnp.zeros((8, LANE), jnp.float32)
    bias = bias.at[0, :ENC_OUT].set(jnp.reshape(be0, (-1,)).astype(jnp.float32))
    bias = bias.at[1, :ENC_OUT].set(jnp.reshape(be1, (-1,)).astype(jnp.float32))
    bias = bias.at[2, :HIDDEN_SIZE].set(jnp.reshape(b1, (-1,)).astype(jnp.float32))
    bias = bias.at[3, :].set(NEG_INF)
    bias = bias.at[3, :STATE_NUMBER].set(jnp.reshape(b2, (-1,)).astype(jnp.float32))

    # ---- batch tiling: ragged grid, no batch padding ----
    TB_MAX = 2048                       # safe under v5e's 16 MiB scoped VMEM
    if B > 8:
        # aim for >= 2 grid steps so both v7x TensorCores get work
        tb_target = _round_up(-(-B // 2), 8)
    else:
        tb_target = _round_up(B, 8)
    TB = max(8, min(TB_MAX, tb_target))
    grid = (pl.cdiv(B, TB),)            # last block may be partial (rows dropped)

    act_spec = lambda cols: pl.BlockSpec((TB, cols), lambda b: (b, 0))
    wgt_spec = lambda shape: pl.BlockSpec(shape, lambda b: (0, 0))  # VMEM-resident

    flops = 2 * B * (2 * in_dim * ENC_P + 2 * ENC_P * HID_P + HID_P * OUT_COLS)
    bytes_accessed = 4 * (B * (2 * in_dim + OUT_COLS)
                          + 2 * in_dim * ENC_P
                          + 2 * ENC_P * HID_P
                          + HID_P * OUT_COLS
                          + 8 * LANE)

    out8 = pl.pallas_call(
        mainnn_kernel,
        out_shape=jax.ShapeDtypeStruct((B, OUT_COLS), jnp.float32),
        grid=grid,
        in_specs=[
            act_spec(in_dim),                   # x0 tile (native lane width)
            act_spec(in_dim),                   # x1 tile
            wgt_spec((in_dim, ENC_P)),          # we0
            wgt_spec((in_dim, ENC_P)),          # we1
            wgt_spec((2 * ENC_P, HID_P)),       # merged w1
            wgt_spec((HID_P, OUT_COLS)),        # w2
            wgt_spec((8, LANE)),                # packed biases
        ],
        out_specs=act_spec(OUT_COLS),
        compiler_params=pltpu.CompilerParams(
            dimension_semantics=("parallel",)),
        cost_estimate=pl.CostEstimate(
            flops=flops,
            transcendentals=B * (OUT_COLS + 1),
            bytes_accessed=bytes_accessed),
    )(x0, x1, we0_p, we1_p, w1m, w2_p, bias)

    # drop the 3 padded class lanes (tiny (B, 8) buffer, negligible cost)
    return out8[:, :STATE_NUMBER]


# ---------------- pure-JAX reference (unpadded) for validation ----------------
def simple_encoder(x, w, b):
    return jnp.maximum(x @ w + b, 0.0)


def reference_forward(x0, x1, we0, be0, we1, be1, w1, b1, w2, b2):
    enc0 = simple_encoder(x0, we0, be0)
    enc1 = simple_encoder(x1, we1, be1)
    x = jnp.concatenate([enc0, enc1], axis=1)
    h = jnp.maximum(x @ w1 + b1, 0.0)
    out = h @ w2 + b2
    return jax.nn.log_softmax(out, axis=-1)


if __name__ == "__main__":
    key = jax.random.PRNGKey(0)
    ks = jax.random.split(key, 10)

    B = 8          # batch
    IN_DIM = 32    # raw encoder input feature size

    # raw inputs (x_0, x_1)
    x0 = jax.random.normal(ks[0], (B, IN_DIM), dtype=jnp.float32)
    x1 = jax.random.normal(ks[1], (B, IN_DIM), dtype=jnp.float32)

    # deterministic encoder params (each encoder -> 100 features)
    we0 = jax.random.normal(ks[2], (IN_DIM, ENC_OUT), dtype=jnp.float32) * 0.1
    be0 = jax.random.normal(ks[3], (ENC_OUT,), dtype=jnp.float32) * 0.1
    we1 = jax.random.normal(ks[4], (IN_DIM, ENC_OUT), dtype=jnp.float32) * 0.1
    be1 = jax.random.normal(ks[5], (ENC_OUT,), dtype=jnp.float32) * 0.1

    # MainNN params (nn.Linear(200,100), nn.Linear(100,5)) — stored as [in, out]
    w1 = jax.random.normal(ks[6], (EMBEDDING_SIZE, HIDDEN_SIZE), dtype=jnp.float32) * 0.05
    b1 = jax.random.normal(ks[7], (HIDDEN_SIZE,), dtype=jnp.float32) * 0.05
    w2 = jax.random.normal(ks[8], (HIDDEN_SIZE, STATE_NUMBER), dtype=jnp.float32) * 0.05
    b2 = jax.random.normal(ks[9], (STATE_NUMBER,), dtype=jnp.float32) * 0.05

    # fused Pallas kernel (encoders + concat-free linear1 + linear2 + log_softmax)
    log_probs = mainnn_forward(x0, x1, we0, be0, we1, be1, w1, b1, w2, b2)
    log_probs = jax.block_until_ready(log_probs)

    # sanity check vs pure-JAX reference
    ref = reference_forward(x0, x1, we0, be0, we1, be1, w1, b1, w2, b2)
    assert log_probs.shape == (B, STATE_NUMBER)
    assert jnp.allclose(log_probs, ref, atol=1e-5, rtol=1e-5), "mismatch vs reference"

    print("KERNEL_OK")
</pallas_src>

<mosaic_0001>
module attributes {stable_mosaic.version = 11 : i64} {
  func.func @mainnn_kernel(%arg0: i32, %arg1: memref<8x32xf32, #tpu.memory_space<vmem>>, %arg2: memref<8x32xf32, #tpu.memory_space<vmem>>, %arg3: memref<32x128xf32, #tpu.memory_space<vmem>>, %arg4: memref<32x128xf32, #tpu.memory_space<vmem>>, %arg5: memref<256x128xf32, #tpu.memory_space<vmem>>, %arg6: memref<128x8xf32, #tpu.memory_space<vmem>>, %arg7: memref<8x128xf32, #tpu.memory_space<vmem>>, %arg8: memref<8x8xf32, #tpu.memory_space<vmem>>) attributes {dimension_semantics = [#tpu.dimension_semantics<parallel>], iteration_bounds = array<i64: 1>, scalar_prefetch = 0 : i64, scratch_operands = 0 : i64, tpu.core_type = #tpu.core_type<tc>, window_params = [{transform_indices = @transform_0, window_bounds = array<i64: 8, 32>}, {transform_indices = @transform_1, window_bounds = array<i64: 8, 32>}, {pipeline_mode = #tpu.pipeline_mode<synchronous>, transform_indices = @transform_2, window_bounds = array<i64: 32, 128>}, {pipeline_mode = #tpu.pipeline_mode<synchronous>, transform_indices = @transform_3, window_bounds = array<i64: 32, 128>}, {pipeline_mode = #tpu.pipeline_mode<synchronous>, transform_indices = @transform_4, window_bounds = array<i64: 256, 128>}, {pipeline_mode = #tpu.pipeline_mode<synchronous>, transform_indices = @transform_5, window_bounds = array<i64: 128, 8>}, {pipeline_mode = #tpu.pipeline_mode<synchronous>, transform_indices = @transform_6, window_bounds = array<i64: 8, 128>}, {transform_indices = @transform_7, window_bounds = array<i64: 8, 8>}]} {
    %c0 = arith.constant 0 : index
    %c0_0 = arith.constant 0 : index
    %0 = vector.load %arg7[%c0, %c0_0] : memref<8x128xf32, #tpu.memory_space<vmem>>, vector<8x128xf32>
    %1 = vector.extract_strided_slice %0 {offsets = [0, 0], sizes = [1, 128], strides = [1, 1]} : vector<8x128xf32> to vector<1x128xf32>
    %2 = vector.extract_strided_slice %0 {offsets = [1, 0], sizes = [1, 128], strides = [1, 1]} : vector<8x128xf32> to vector<1x128xf32>
    %3 = vector.extract_strided_slice %0 {offsets = [2, 0], sizes = [1, 128], strides = [1, 1]} : vector<8x128xf32> to vector<1x128xf32>
    %4 = vector.extract_strided_slice %0 {offsets = [3, 0], sizes = [1, 8], strides = [1, 1]} : vector<8x128xf32> to vector<1x8xf32>
    %c0_1 = arith.constant 0 : index
    %c0_2 = arith.constant 0 : index
    %5 = vector.load %arg1[%c0_1, %c0_2] : memref<8x32xf32, #tpu.memory_space<vmem>>, vector<8x32xf32>
    %c0_3 = arith.constant 0 : index
    %c0_4 = arith.constant 0 : index
    %6 = vector.load %arg3[%c0_3, %c0_4] : memref<32x128xf32, #tpu.memory_space<vmem>>, vector<32x128xf32>
    %cst = arith.constant dense<0.000000e+00> : vector<8x128xf32>
    %7 = tpu.matmul %5, %6, %cst {dimension_numbers = #tpu.dot_dimension_numbers<[1], [0], [0], [1], [0, 0, 1, 1], [], []>} : vector<8x32xf32>, vector<32x128xf32>, vector<8x128xf32> -> vector<8x128xf32>
    %8 = vector.broadcast %1 : vector<1x128xf32> to vector<8x128xf32>
    %9 = arith.addf %7, %8 : vector<8x128xf32>
    %cst_5 = arith.constant 0.000000e+00 : f32
    %10 = vector.broadcast %cst_5 : f32 to vector<8x128xf32>
    %11 = arith.maximumf %9, %10 : vector<8x128xf32>
    %c0_6 = arith.constant 0 : index
    %c0_7 = arith.constant 0 : index
    %12 = vector.load %arg2[%c0_6, %c0_7] : memref<8x32xf32, #tpu.memory_space<vmem>>, vector<8x32xf32>
    %c0_8 = arith.constant 0 : index
    %c0_9 = arith.constant 0 : index
    %13 = vector.load %arg4[%c0_8, %c0_9] : memref<32x128xf32, #tpu.memory_space<vmem>>, vector<32x128xf32>
    %cst_10 = arith.constant dense<0.000000e+00> : vector<8x128xf32>
    %14 = tpu.matmul %12, %13, %cst_10 {dimension_numbers = #tpu.dot_dimension_numbers<[1], [0], [0], [1], [0, 0, 1, 1], [], []>} : vector<8x32xf32>, vector<32x128xf32>, vector<8x128xf32> -> vector<8x128xf32>
    %15 = vector.broadcast %2 : vector<1x128xf32> to vector<8x128xf32>
    %16 = arith.addf %14, %15 : vector<8x128xf32>
    %cst_11 = arith.constant 0.000000e+00 : f32
    %17 = vector.broadcast %cst_11 : f32 to vector<8x128xf32>
    %18 = arith.maximumf %16, %17 : vector<8x128xf32>
    %19 = tpu.concatenate %11, %18 in 1 : vector<8x128xf32>, vector<8x128xf32> -> vector<8x256xf32>
    %c0_12 = arith.constant 0 : index
    %c0_13 = arith.constant 0 : index
    %20 = vector.load %arg5[%c0_12, %c0_13] : memref<256x128xf32, #tpu.memory_space<vmem>>, vector<256x128xf32>
    %cst_14 = arith.constant dense<0.000000e+00> : vector<8x128xf32>
    %21 = tpu.matmul %19, %20, %cst_14 {dimension_numbers = #tpu.dot_dimension_numbers<[1], [0], [0], [1], [0, 0, 1, 1], [], []>} : vector<8x256xf32>, vector<256x128xf32>, vector<8x128xf32> -> vector<8x128xf32>
    %22 = vector.broadcast %3 : vector<1x128xf32> to vector<8x128xf32>
    %23 = arith.addf %21, %22 : vector<8x128xf32>
    %cst_15 = arith.constant 0.000000e+00 : f32
    %24 = vector.broadcast %cst_15 : f32 to vector<8x128xf32>
    %25 = arith.maximumf %23, %24 : vector<8x128xf32>
    %c0_16 = arith.constant 0 : index
    %c0_17 = arith.constant 0 : index
    %26 = vector.load %arg6[%c0_16, %c0_17] : memref<128x8xf32, #tpu.memory_space<vmem>>, vector<128x8xf32>
    %cst_18 = arith.constant dense<0.000000e+00> : vector<8x8xf32>
    %27 = tpu.matmul %25, %26, %cst_18 {dimension_numbers = #tpu.dot_dimension_numbers<[1], [0], [0], [1], [0, 0, 1, 1], [], []>} : vector<8x128xf32>, vector<128x8xf32>, vector<8x8xf32> -> vector<8x8xf32>
    %28 = vector.broadcast %4 : vector<1x8xf32> to vector<8x8xf32>
    %29 = arith.addf %27, %28 : vector<8x8xf32>
    %cst_19 = arith.constant dense<0xFF800000> : vector<8xf32>
    %30 = vector.multi_reduction <maximumf>, %29, %cst_19 [1] : vector<8x8xf32> to vector<8xf32>
    %31 = vector.shape_cast %30 : vector<8xf32> to vector<8x1xf32>
    %32 = vector.broadcast %31 : vector<8x1xf32> to vector<8x8xf32>
    %33 = arith.subf %29, %32 : vector<8x8xf32>
    %34 = math.exp %33 : vector<8x8xf32>
    %cst_20 = arith.constant dense<0.000000e+00> : vector<8xf32>
    %35 = vector.multi_reduction <add>, %34, %cst_20 [1] : vector<8x8xf32> to vector<8xf32>
    %36 = vector.shape_cast %35 : vector<8xf32> to vector<8x1xf32>
    %37 = math.log %36 : vector<8x1xf32>
    %38 = vector.broadcast %37 : vector<8x1xf32> to vector<8x8xf32>
    %39 = arith.subf %33, %38 : vector<8x8xf32>
    %c0_21 = arith.constant 0 : index
    %c0_22 = arith.constant 0 : index
    %40 = vector.load %arg8[%c0_21, %c0_22] : memref<8x8xf32, #tpu.memory_space<vmem>>, vector<8x8xf32>
    tpu.vector_store %arg8[%c0_21, %c0_22], %39 {strides = array<i32>} : memref<8x8xf32, #tpu.memory_space<vmem>>, vector<8x8xf32>,
    return
  }
  func.func @transform_0(%arg0: i32) -> (i32, i32) {
    %c0_i32 = arith.constant 0 : i32
    %c0_i32_0 = arith.constant 0 : i32
    return %arg0, %c0_i32 : i32, i32
  }
  func.func @transform_1(%arg0: i32) -> (i32, i32) {
    %c0_i32 = arith.constant 0 : i32
    %c0_i32_0 = arith.constant 0 : i32
    return %arg0, %c0_i32 : i32, i32
  }
  func.func @transform_2(%arg0: i32) -> (i32, i32) {
    %c0_i32 = arith.constant 0 : i32
    %c0_i32_0 = arith.constant 0 : i32
    %c0_i32_1 = arith.constant 0 : i32
    return %c0_i32, %c0_i32_0 : i32, i32
  }
  func.func @transform_3(%arg0: i32) -> (i32, i32) {
    %c0_i32 = arith.constant 0 : i32
    %c0_i32_0 = arith.constant 0 : i32
    %c0_i32_1 = arith.constant 0 : i32
    return %c0_i32, %c0_i32_0 : i32, i32
  }
  func.func @transform_4(%arg0: i32) -> (i32, i32) {
    %c0_i32 = arith.constant 0 : i32
    %c0_i32_0 = arith.constant 0 : i32
    %c0_i32_1 = arith.constant 0 : i32
    return %c0_i32, %c0_i32_0 : i32, i32
  }
  func.func @transform_5(%arg0: i32) -> (i32, i32) {
    %c0_i32 = arith.constant 0 : i32
    %c0_i32_0 = arith.constant 0 : i32
    %c0_i32_1 = arith.constant 0 : i32
    return %c0_i32, %c0_i32_0 : i32, i32
  }
  func.func @transform_6(%arg0: i32) -> (i32, i32) {
    %c0_i32 = arith.constant 0 : i32
    %c0_i32_0 = arith.constant 0 : i32
    %c0_i32_1 = arith.constant 0 : i32
    return %c0_i32, %c0_i32_0 : i32, i32
  }
  func.func @transform_7(%arg0: i32) -> (i32, i32) {
    %c0_i32 = arith.constant 0 : i32
    %c0_i32_0 = arith.constant 0 : i32
    return %arg0, %c0_i32 : i32, i32
  }
}

</mosaic_0001>

<llo_original>
// kernel: tpu_custom_call.1
$region0: #{tpu_custom_call.1}
  #allocation0 [shape = 'u32[]', space=smem, size = 0x4, offset = 0x4, fixed_abs, tag = 'smem constant byte address 0x4 - core index']
  #allocation1 [shape = 'u32[144,128]{1,0:T(1,128)}', space=vmem, size = 0x12000, scoped, tag = 'internal scratch']
  %s0 = inlined_call_operand.vmem [shape: f32[8,32], index: 0, kind: input, shape index: {}]
  %s1 = inlined_call_operand.vmem [shape: f32[8,32], index: 1, kind: input, shape index: {}]
  %s2 = inlined_call_operand.vmem [shape: f32[32,128], index: 2, kind: input, shape index: {}]
  %s3 = inlined_call_operand.vmem [shape: f32[32,128], index: 3, kind: input, shape index: {}]
  %s4 = inlined_call_operand.hbm [shape: f32[256,128], index: 4, kind: input, shape index: {}]
  %s5 = inlined_call_operand.vmem [shape: f32[128,8], index: 5, kind: input, shape index: {}]
  %s6 = inlined_call_operand.vmem [shape: f32[8,128], index: 6, kind: input, shape index: {}]
  %s7 = inlined_call_operand.hbm [shape: f32[8,8], index: 7, kind: output, shape index: {}]
  %s8 = sld [smem:[#allocation0]]
  $region42: #{tpu_custom_call.1} parent=0
    _
  %s10 = ssub.s32 1, %s8
  %s11 = scalar_select 0, %s10, %s8
  $region1: #{tpu_custom_call.1} parent=0
    #allocation2 [shape = 'u8[131072]{0}', space=vmem, size = 0x20000, scoped, tag = 'input window, operand 4, single buffered']
    #allocation3 [shape = 's32[1]{0}', space=sflag, size = 0x4, scoped, tag = 'scoped memory for tpu_custom_call.1']
    #allocation4 [shape = 's32[1]{0}', space=sflag, size = 0x4, scoped, tag = 'scoped memory for tpu_custom_call.1']
    #allocation5 [shape = 'u8[4096]{0}', space=vmem, size = 0x1000, scoped, tag = 'output window, operand 0, single buffered']
    %12 = vsyncpa [#allocation3], 0
    %13 = vsyncpa [#allocation4], 0
    // Predicated region
    $region2: #{tpu_custom_call.1} parent=1 // pred_check
      _
    $region3: #{tpu_custom_call.1} parent=1 // pred_check_branch
      %15 = sbr.rel (0) target = $region5
    $region4: #{tpu_custom_call.1} parent=1 // pred_region
      _
    $region5: #{tpu_custom_call.1} parent=1 // pred_fallthru
      _
    // Predicated region
    $region6: #{tpu_custom_call.1} parent=1 // pred_check
      _
    $region7: #{tpu_custom_call.1} parent=1 // pred_check_branch
      %17 = sbr.rel (0) target = $region9
    $region8: #{tpu_custom_call.1} parent=1 // pred_region
      _
    $region9: #{tpu_custom_call.1} parent=1 // pred_fallthru
      _
    // Predicated region
    $region10: #{tpu_custom_call.1} parent=1 // pred_check
      _
    $region11: #{tpu_custom_call.1} parent=1 // pred_check_branch
      %19 = sbr.rel (0) target = $region13
    $region12: #{tpu_custom_call.1} parent=1 // pred_region
      _
    $region13: #{tpu_custom_call.1} parent=1 // pred_fallthru
      _
    // Predicated region
    $region14: #{tpu_custom_call.1} parent=1 // pred_check
      _
    $region15: #{tpu_custom_call.1} parent=1 // pred_check_branch
      %21 = sbr.rel (0) target = $region17
    $region16: #{tpu_custom_call.1} parent=1 // pred_region
      _
    $region17: #{tpu_custom_call.1} parent=1 // pred_fallthru
      _
    // Predicated region
    $region18: #{tpu_custom_call.1} parent=1 // pred_check
      _
    $region19: #{tpu_custom_call.1} parent=1 // pred_check_branch
      %23 = sbr.rel (0) target = $region21
    $region20: #{tpu_custom_call.1} parent=1 // pred_region
      %s25 = ssub.s32 4096, 4096
      %26 = vsyncadd [#allocation3], %s25
      %s27 = sshll.u32 [#allocation2], 4
      %s28 = int_to_ptr.vmem [resolvable:$true] %s27
      %33 = dma.hbm_to_vmem [thread:$0]  %s4, 4096, %s28, [#allocation3], 128, 128, 8
    $region21: #{tpu_custom_call.1} parent=1 // pred_fallthru
      _
    // Predicated region
    $region22: #{tpu_custom_call.1} parent=1 // pred_check
      _
    $region23: #{tpu_custom_call.1} parent=1 // pred_check_branch
      %35 = sbr.rel (0) target = $region25
    $region24: #{tpu_custom_call.1} parent=1 // pred_region
      _
    $region25: #{tpu_custom_call.1} parent=1 // pred_fallthru
      _
    // Predicated region
    $region26: #{tpu_custom_call.1} parent=1 // pred_check
      _
    $region27: #{tpu_custom_call.1} parent=1 // pred_check_branch
      %37 = sbr.rel (0) target = $region29
    $region28: #{tpu_custom_call.1} parent=1 // pred_region
      _
    $region29: #{tpu_custom_call.1} parent=1 // pred_fallthru
      _
    // Predicated region
    $region30: #{tpu_custom_call.1} parent=1 // pred_check
      _
    $region31: #{tpu_custom_call.1} parent=1 // pred_check_branch
      %39 = sbr.rel (0) target = $region33
    $region32: #{tpu_custom_call.1} parent=1 // pred_region
      %40 = dma.done [#allocation3], 4096
    $region33: #{tpu_custom_call.1} parent=1 // pred_fallthru
      _
    %v41 = vld [vmem:[%s6] sm:$0xff]
    %v42 = vld [vmem:[%s0] sm:$0xff]
    %v43 = vld [vmem:[%s2] sm:$0xff]
    %v44 = vld [vmem:[%s2 + $0x8] sm:$0xff]
    %v45 = vld [vmem:[%s2 + $0x10] sm:$0xff]
    %v46 = vld [vmem:[%s2 + $0x18] sm:$0xff]
    %v47 = vlaneseq
    %v48 = vshrl.u32 %v47, 7
    %v49 = vsub.s32 0, %v48
    %v50 = vrot.slane %v41, %v49
    %vm51 = vcmask 261120
    %v53 = vsel %vm51, %v42, 0
    %55 = vmatprep.subr.mxu0 0.0
    %56 = vmatpush1.msra.mxu0 %v43
    %57 = vmatprep.subr.mxu0 0.0
    %58 = vmatpush1.msra.mxu0 %v44
    %59 = vmatprep.subr.mxu0 0.0
    %60 = vmatpush1.msra.mxu0 %v45
    %61 = vmatprep.subr.mxu0 0.0
    %62 = vmatpush1.msra.mxu0 %v46
    %63 = vmatprep.subr.mxu0 0.0
    %64 = vmatpush1.msra.mxu0 0.0
    %65 = vmatprep.subr.mxu0 0.0
    %66 = vmatpush1.msra.mxu0 0.0
    %67 = vmatprep.subr.mxu0 0.0
    %68 = vmatpush1.msra.mxu0 0.0
    %69 = vmatprep.subr.mxu0 0.0
    %70 = vmatpush1.msra.mxu0 0.0
    %71 = vmatprep.subr.mxu0 0.0
    %72 = vmatpush1.msra.mxu0 0.0
    %73 = vmatprep.subr.mxu0 0.0
    %74 = vmatpush1.msra.mxu0 0.0
    %75 = vmatprep.subr.mxu0 0.0
    %76 = vmatpush1.msra.mxu0 0.0
    %77 = vmatprep.subr.mxu0 0.0
    %78 = vmatpush1.msra.mxu0 0.0
    %79 = vmatprep.subr.mxu0 0.0
    %80 = vmatpush1.msra.mxu0 0.0
    %81 = vmatprep.subr.mxu0 0.0
    %82 = vmatpush1.msra.mxu0 0.0
    %83 = vmatprep.subr.mxu0 0.0
    %84 = vmatpush1.msra.mxu0 0.0
    %85 = vmatprep.subr.mxu0 0.0
    %86 = vmatpush1.msra.mxu0 0.0
    %87 = vmatprep.subr.mxu0 0.0
    %88 = vmatpush1.msra.mxu0 0.0
    %89 = vmatprep.subr.mxu0 0.0
    %90 = vmatpush1.msra.mxu0 0.0
    %91 = vmatprep.subr.mxu0 0.0
    %92 = vmatpush1.msra.mxu0 0.0
    %93 = vmatprep.subr.mxu0 0.0
    %94 = vmatpush1.msra.mxu0 0.0
    %95 = vmatprep.subr.mxu0 0.0
    %96 = vmatpush1.msra.mxu0 0.0
    %97 = vmatprep.subr.mxu0 0.0
    %98 = vmatpush1.msra.mxu0 0.0
    %99 = vmatprep.subr.mxu0 0.0
    %100 = vmatpush1.msra.mxu0 0.0
    %101 = vmatprep.subr.mxu0 0.0
    %102 = vmatpush1.msra.mxu0 0.0
    %103 = vmatprep.subr.mxu0 0.0
    %104 = vmatpush1.msra.mxu0 0.0
    %105 = vmatprep.subr.mxu0 0.0
    %106 = vmatpush1.msra.mxu0 0.0
    %107 = vmatprep.subr.mxu0 0.0
    %108 = vmatpush1.msra.mxu0 0.0
    %109 = vmatprep.subr.mxu0 0.0
    %110 = vmatpush1.msra.mxu0 0.0
    %111 = vmatprep.subr.mxu0 0.0
    %112 = vmatpush1.msra.mxu0 0.0
    %113 = vmatprep.subr.mxu0 0.0
    %114 = vmatpush1.msra.mxu0 0.0
    %115 = vmatprep.subr.mxu0 0.0
    %116 = vmatpush1.msra.mxu0 0.0
    %117 = vmatprep.subr.mxu0 0.0
    %118 = vmatpush1.msra.mxu0 0.0
    %119 = vmatprep.mubr.f32.mxu0 0.0
    %120 = vmatmul.mubr.f32.gmra.mrb[0].mxu0 %v53
    %v121 = vpop.f32.mrb[0].mxu0
    %v122 = vadd.f32 %v50, %v121
    %v123 = vpop.f32.mrb[0].mxu0
    %124 = vdwg.mxu0
    %v125 = vmax.f32 %v122, 0.0
    %v126 = vld [vmem:[%s1] sm:$0xff]
    %v127 = vld [vmem:[%s3] sm:$0xff]
    %v128 = vld [vmem:[%s3 + $0x8] sm:$0xff]
    %v129 = vld [vmem:[%s3 + $0x10] sm:$0xff]
    %v130 = vld [vmem:[%s3 + $0x18] sm:$0xff]
    %v131 = vlaneseq
    %v132 = vshrl.u32 %v131, 7
    %v133 = vsub.s32 1, %v132
    %v134 = vrot.slane %v41, %v133
    %v136 = vsel %vm51, %v126, 0
    %138 = vmatprep.subr.mxu0 0.0
    %139 = vmatpush1.msra.mxu0 %v127
    %140 = vmatprep.subr.mxu0 0.0
    %141 = vmatpush1.msra.mxu0 %v128
    %142 = vmatprep.subr.mxu0 0.0
    %143 = vmatpush1.msra.mxu0 %v129
    %144 = vmatprep.subr.mxu0 0.0
    %145 = vmatpush1.msra.mxu0 %v130
    %146 = vmatprep.subr.mxu0 0.0
    %147 = vmatpush1.msra.mxu0 0.0
    %148 = vmatprep.subr.mxu0 0.0
    %149 = vmatpush1.msra.mxu0 0.0
    %150 = vmatprep.subr.mxu0 0.0
    %151 = vmatpush1.msra.mxu0 0.0
    %152 = vmatprep.subr.mxu0 0.0
    %153 = vmatpush1.msra.mxu0 0.0
    %154 = vmatprep.subr.mxu0 0.0
    %155 = vmatpush1.msra.mxu0 0.0
    %156 = vmatprep.subr.mxu0 0.0
    %157 = vmatpush1.msra.mxu0 0.0
    %158 = vmatprep.subr.mxu0 0.0
    %159 = vmatpush1.msra.mxu0 0.0
    %160 = vmatprep.subr.mxu0 0.0
    %161 = vmatpush1.msra.mxu0 0.0
    %162 = vmatprep.subr.mxu0 0.0
    %163 = vmatpush1.msra.mxu0 0.0
    %164 = vmatprep.subr.mxu0 0.0
    %165 = vmatpush1.msra.mxu0 0.0
    %166 = vmatprep.subr.mxu0 0.0
    %167 = vmatpush1.msra.mxu0 0.0
    %168 = vmatprep.subr.mxu0 0.0
    %169 = vmatpush1.msra.mxu0 0.0
    %170 = vmatprep.subr.mxu0 0.0
    %171 = vmatpush1.msra.mxu0 0.0
    %172 = vmatprep.subr.mxu0 0.0
    %173 = vmatpush1.msra.mxu0 0.0
    %174 = vmatprep.subr.mxu0 0.0
    %175 = vmatpush1.msra.mxu0 0.0
    %176 = vmatprep.subr.mxu0 0.0
    %177 = vmatpush1.msra.mxu0 0.0
    %178 = vmatprep.subr.mxu0 0.0
    %179 = vmatpush1.msra.mxu0 0.0
    %180 = vmatprep.subr.mxu0 0.0
    %181 = vmatpush1.msra.mxu0 0.0
    %182 = vmatprep.subr.mxu0 0.0
    %183 = vmatpush1.msra.mxu0 0.0
    %184 = vmatprep.subr.mxu0 0.0
    %185 = vmatpush1.msra.mxu0 0.0
    %186 = vmatprep.subr.mxu0 0.0
    %187 = vmatpush1.msra.mxu0 0.0
    %188 = vmatprep.subr.mxu0 0.0
    %189 = vmatpush1.msra.mxu0 0.0
    %190 = vmatprep.subr.mxu0 0.0
    %191 = vmatpush1.msra.mxu0 0.0
    %192 = vmatprep.subr.mxu0 0.0
    %193 = vmatpush1.msra.mxu0 0.0
    %194 = vmatprep.subr.mxu0 0.0
    %195 = vmatpush1.msra.mxu0 0.0
    %196 = vmatprep.subr.mxu0 0.0
    %197 = vmatpush1.msra.mxu0 0.0
    %198 = vmatprep.subr.mxu0 0.0
    %199 = vmatpush1.msra.mxu0 0.0
    %200 = vmatprep.subr.mxu0 0.0
    %201 = vmatpush1.msra.mxu0 0.0
    %202 = vmatprep.mubr.f32.mxu0 0.0
    %203 = vmatmul.mubr.f32.gmra.mrb[0].mxu0 %v136
    %v204 = vpop.f32.mrb[0].mxu0
    %v205 = vadd.f32 %v134, %v204
    %v206 = vpop.f32.mrb[0].mxu0
    %207 = vdwg.mxu0
    %v208 = vmax.f32 %v205, 0.0
    %v209 = vld [vmem:[#allocation2] sm:$0xff]
    %v210 = vld [vmem:[#allocation2 + $0x8] sm:$0xff]
    %v211 = vld [vmem:[#allocation2 + $0x10] sm:$0xff]
    %v212 = vld [vmem:[#allocation2 + $0x18] sm:$0xff]
    %v213 = vld [vmem:[#allocation2 + $0x20] sm:$0xff]
    %v214 = vld [vmem:[#allocation2 + $0x28] sm:$0xff]
    %v215 = vld [vmem:[#allocation2 + $0x30] sm:$0xff]
    %v216 = vld [vmem:[#allocation2 + $0x38] sm:$0xff]
    %v217 = vld [vmem:[#allocation2 + $0x40] sm:$0xff]
    %v218 = vld [vmem:[#allocation2 + $0x48] sm:$0xff]
    %v219 = vld [vmem:[#allocation2 + $0x50] sm:$0xff]
    %v220 = vld [vmem:[#allocation2 + $0x58] sm:$0xff]
    %v221 = vld [vmem:[#allocation2 + $0x60] sm:$0xff]
    %v222 = vld [vmem:[#allocation2 + $0x68] sm:$0xff]
    %v223 = vld [vmem:[#allocation2 + $0x70] sm:$0xff]
    %v224 = vld [vmem:[#allocation2 + $0x78] sm:$0xff]
    %v225 = vld [vmem:[#allocation2 + $0x80] sm:$0xff]
    %v226 = vld [vmem:[#allocation2 + $0x88] sm:$0xff]
    %v227 = vld [vmem:[#allocation2 + $0x90] sm:$0xff]
    %v228 = vld [vmem:[#allocation2 + $0x98] sm:$0xff]
    %v229 = vld [vmem:[#allocation2 + $0xa0] sm:$0xff]
    %v230 = vld [vmem:[#allocation2 + $0xa8] sm:$0xff]
    %v231 = vld [vmem:[#allocation2 + $0xb0] sm:$0xff]
    %v232 = vld [vmem:[#allocation2 + $0xb8] sm:$0xff]
    %v233 = vld [vmem:[#allocation2 + $0xc0] sm:$0xff]
    %v234 = vld [vmem:[#allocation2 + $0xc8] sm:$0xff]
    %v235 = vld [vmem:[#allocation2 + $0xd0] sm:$0xff]
    %v236 = vld [vmem:[#allocation2 + $0xd8] sm:$0xff]
    %v237 = vld [vmem:[#allocation2 + $0xe0] sm:$0xff]
    %v238 = vld [vmem:[#allocation2 + $0xe8] sm:$0xff]
    %v239 = vld [vmem:[#allocation2 + $0xf0] sm:$0xff]
    %v240 = vld [vmem:[#allocation2 + $0xf8] sm:$0xff]
    %v241 = vlaneseq
    %v242 = vshrl.u32 %v241, 7
    %v243 = vsub.s32 2, %v242
    %v244 = vrot.slane %v41, %v243
    %245 = vmatprep.subr.mxu0 0.0
    %246 = vmatpush1.msra.mxu0 %v209
    %247 = vmatprep.subr.mxu0 0.0
    %248 = vmatpush1.msra.mxu0 %v210
    %249 = vmatprep.subr.mxu0 0.0
    %250 = vmatpush1.msra.mxu0 %v211
    %251 = vmatprep.subr.mxu0 0.0
    %252 = vmatpush1.msra.mxu0 %v212
    %253 = vmatprep.subr.mxu0 0.0
    %254 = vmatpush1.msra.mxu0 %v213
    %255 = vmatprep.subr.mxu0 0.0
    %256 = vmatpush1.msra.mxu0 %v214
    %257 = vmatprep.subr.mxu0 0.0
    %258 = vmatpush1.msra.mxu0 %v215
    %259 = vmatprep.subr.mxu0 0.0
    %260 = vmatpush1.msra.mxu0 %v216
    %261 = vmatprep.subr.mxu0 0.0
    %262 = vmatpush1.msra.mxu0 %v217
    %263 = vmatprep.subr.mxu0 0.0
    %264 = vmatpush1.msra.mxu0 %v218
    %265 = vmatprep.subr.mxu0 0.0
    %266 = vmatpush1.msra.mxu0 %v219
    %267 = vmatprep.subr.mxu0 0.0
    %268 = vmatpush1.msra.mxu0 %v220
    %269 = vmatprep.subr.mxu0 0.0
    %270 = vmatpush1.msra.mxu0 %v221
    %271 = vmatprep.subr.mxu0 0.0
    %272 = vmatpush1.msra.mxu0 %v222
    %273 = vmatprep.subr.mxu0 0.0
    %274 = vmatpush1.msra.mxu0 %v223
    %275 = vmatprep.subr.mxu0 0.0
    %276 = vmatpush1.msra.mxu0 %v224
    %277 = vmatprep.subr.mxu0 0.0
    %278 = vmatpush1.msra.mxu0 %v225
    %279 = vmatprep.subr.mxu0 0.0
    %280 = vmatpush1.msra.mxu0 %v226
    %281 = vmatprep.subr.mxu0 0.0
    %282 = vmatpush1.msra.mxu0 %v227
    %283 = vmatprep.subr.mxu0 0.0
    %284 = vmatpush1.msra.mxu0 %v228
    %285 = vmatprep.subr.mxu0 0.0
    %286 = vmatpush1.msra.mxu0 %v229
    %287 = vmatprep.subr.mxu0 0.0
    %288 = vmatpush1.msra.mxu0 %v230
    %289 = vmatprep.subr.mxu0 0.0
    %290 = vmatpush1.msra.mxu0 %v231
    %291 = vmatprep.subr.mxu0 0.0
    %292 = vmatpush1.msra.mxu0 %v232
    %293 = vmatprep.subr.mxu0 0.0
    %294 = vmatpush1.msra.mxu0 %v233
    %295 = vmatprep.subr.mxu0 0.0
    %296 = vmatpush1.msra.mxu0 %v234
    %297 = vmatprep.subr.mxu0 0.0
    %298 = vmatpush1.msra.mxu0 %v235
    %299 = vmatprep.subr.mxu0 0.0
    %300 = vmatpush1.msra.mxu0 %v236
    %301 = vmatprep.subr.mxu0 0.0
    %302 = vmatpush1.msra.mxu0 %v237
    %303 = vmatprep.subr.mxu0 0.0
    %304 = vmatpush1.msra.mxu0 %v238
    %305 = vmatprep.subr.mxu0 0.0
    %306 = vmatpush1.msra.mxu0 %v239
    %307 = vmatprep.subr.mxu0 0.0
    %308 = vmatpush1.msra.mxu0 %v240
    %309 = vmatprep.mubr.f32.mxu0 %v208
    %310 = vmatmul.mubr.f32.gmra.mrb[0].mxu0 %v125
    %v311 = vpop.f32.mrb[0].mxu0
    %v312 = vadd.f32 %v244, %v311
    %v313 = vpop.f32.mrb[0].mxu0
    %314 = vdwg.mxu0
    %v315 = vmax.f32 %v312, 0.0
    %v316 = vld [vmem:[%s5] sm:$0xff]
    %v317 = vld [vmem:[%s5 + $0x8] sm:$0xff]
    %v318 = vld [vmem:[%s5 + $0x10] sm:$0xff]
    %v319 = vld [vmem:[%s5 + $0x18] sm:$0xff]
    %v320 = vld [vmem:[%s5 + $0x20] sm:$0xff]
    %v321 = vld [vmem:[%s5 + $0x28] sm:$0xff]
    %v322 = vld [vmem:[%s5 + $0x30] sm:$0xff]
    %v323 = vld [vmem:[%s5 + $0x38] sm:$0xff]
    %v324 = vld [vmem:[%s5 + $0x40] sm:$0xff]
    %v325 = vld [vmem:[%s5 + $0x48] sm:$0xff]
    %v326 = vld [vmem:[%s5 + $0x50] sm:$0xff]
    %v327 = vld [vmem:[%s5 + $0x58] sm:$0xff]
    %v328 = vld [vmem:[%s5 + $0x60] sm:$0xff]
    %v329 = vld [vmem:[%s5 + $0x68] sm:$0xff]
    %v330 = vld [vmem:[%s5 + $0x70] sm:$0xff]
    %v331 = vld [vmem:[%s5 + $0x78] sm:$0xff]
    %v332 = vlaneseq
    %v333 = vshrl.u32 %v332, 7
    %v334 = vsub.s32 3, %v333
    %v335 = vrot.slane %v41, %v334
    %336 = vmatprep.subr.mxu0 0.0
    %337 = vmatpush1.msra.mxu0 %v316
    %338 = vmatprep.subr.mxu0 0.0
    %339 = vmatpush1.msra.mxu0 %v317
    %340 = vmatprep.subr.mxu0 0.0
    %341 = vmatpush1.msra.mxu0 %v318
    %342 = vmatprep.subr.mxu0 0.0
    %343 = vmatpush1.msra.mxu0 %v319
    %344 = vmatprep.subr.mxu0 0.0
    %345 = vmatpush1.msra.mxu0 %v320
    %346 = vmatprep.subr.mxu0 0.0
    %347 = vmatpush1.msra.mxu0 %v321
    %348 = vmatprep.subr.mxu0 0.0
    %349 = vmatpush1.msra.mxu0 %v322
    %350 = vmatprep.subr.mxu0 0.0
    %351 = vmatpush1.msra.mxu0 %v323
    %352 = vmatprep.subr.mxu0 0.0
    %353 = vmatpush1.msra.mxu0 %v324
    %354 = vmatprep.subr.mxu0 0.0
    %355 = vmatpush1.msra.mxu0 %v325
    %356 = vmatprep.subr.mxu0 0.0
    %357 = vmatpush1.msra.mxu0 %v326
    %358 = vmatprep.subr.mxu0 0.0
    %359 = vmatpush1.msra.mxu0 %v327
    %360 = vmatprep.subr.mxu0 0.0
    %361 = vmatpush1.msra.mxu0 %v328
    %362 = vmatprep.subr.mxu0 0.0
    %363 = vmatpush1.msra.mxu0 %v329
    %364 = vmatprep.subr.mxu0 0.0
    %365 = vmatpush1.msra.mxu0 %v330
    %366 = vmatprep.subr.mxu0 0.0
    %367 = vmatpush1.msra.mxu0 %v331
    %368 = vmatprep.subr.mxu0 0.0
    %369 = vmatpush1.msra.mxu0 0.0
    %370 = vmatprep.subr.mxu0 0.0
    %371 = vmatpush1.msra.mxu0 0.0
    %372 = vmatprep.subr.mxu0 0.0
    %373 = vmatpush1.msra.mxu0 0.0
    %374 = vmatprep.subr.mxu0 0.0
    %375 = vmatpush1.msra.mxu0 0.0
    %376 = vmatprep.subr.mxu0 0.0
    %377 = vmatpush1.msra.mxu0 0.0
    %378 = vmatprep.subr.mxu0 0.0
    %379 = vmatpush1.msra.mxu0 0.0
    %380 = vmatprep.subr.mxu0 0.0
    %381 = vmatpush1.msra.mxu0 0.0
    %382 = vmatprep.subr.mxu0 0.0
    %383 = vmatpush1.msra.mxu0 0.0
    %384 = vmatprep.subr.mxu0 0.0
    %385 = vmatpush1.msra.mxu0 0.0
    %386 = vmatprep.subr.mxu0 0.0
    %387 = vmatpush1.msra.mxu0 0.0
    %388 = vmatprep.subr.mxu0 0.0
    %389 = vmatpush1.msra.mxu0 0.0
    %390 = vmatprep.subr.mxu0 0.0
    %391 = vmatpush1.msra.mxu0 0.0
    %392 = vmatprep.subr.mxu0 0.0
    %393 = vmatpush1.msra.mxu0 0.0
    %394 = vmatprep.subr.mxu0 0.0
    %395 = vmatpush1.msra.mxu0 0.0
    %396 = vmatprep.subr.mxu0 0.0
    %397 = vmatpush1.msra.mxu0 0.0
    %398 = vmatprep.subr.mxu0 0.0
    %399 = vmatpush1.msra.mxu0 0.0
    %400 = vmatprep.mubr.f32.mxu0 0.0
    %401 = vmatmul.mubr.f32.gmra.mrb[0].mxu0 %v315
    %v402 = vpop.f32.mrb[0].mxu0
    %v403 = vadd.f32 %v335, %v402
    %v404 = vpop.f32.mrb[0].mxu0
    %405 = vdwg.mxu0
    %vm406 = vcmask 64512
    %v407 = vsel %vm406, %v403, -inf
    %408 = vmax.xlane.f32.xlu0 %v407
    %v409 = vpop.xlane.xlu0 %408
    %v410 = vsub.f32 %v403, %v409
    %v411 = vmul.f32 %v410, 1.442695
    %v412 = vpow.pop %v411
    %v413 = vsel %vm406, %v412, 0.0
    %414 = vadd.xlane.f32.xlu0 %v413
    %v415 = vpop.xlane.xlu0 %414
    %v416 = vlog2.pop %v415
    %v417 = vmul.f32 %v416, 0.6931472
    %v418 = vsub.f32 %v410, %v417
    %419 = vst.msk [vmem:[#allocation5] sm:$0xff] %vm406, %v418
    // Predicated region
    $region34: #{tpu_custom_call.1} parent=1 // pred_check
      _
    $region35: #{tpu_custom_call.1} parent=1 // pred_check_branch
      %421 = sbr.rel (0) target = $region37
    $region36: #{tpu_custom_call.1} parent=1 // pred_region
      %s423 = ssub.s32 128, 128
      %424 = vsyncadd [#allocation4], %s423
      %s426 = sshll.u32 [#allocation5], 4
      %s427 = int_to_ptr.vmem [resolvable:$true] %s426
      %429 = dma.vmem_to_hbm [thread:$0]  %s427, 128, %s7, [#allocation4]
    $region37: #{tpu_custom_call.1} parent=1 // pred_fallthru
      _
    // Predicated region
    $region38: #{tpu_custom_call.1} parent=1 // pred_check
      _
    $region39: #{tpu_custom_call.1} parent=1 // pred_check_branch
      %431 = sbr.rel (0) target = $region41
    $region40: #{tpu_custom_call.1} parent=1 // pred_region
      %432 = dma.done [#allocation4], 128
    $region41: #{tpu_custom_call.1} parent=1 // pred_fallthru
      _
    %433 = vsyncpa [#allocation3], 1
    %434 = vsyncpa [#allocation4], 1

</llo_original>
